<compile_context>
chip_gen: v7x
topology: tpu7x:2x2x1
jax: 0.10.0
libtpu: 0.0.40
codegen_flags: <defaults>
</compile_context>

<pallas_src>
import functools

import jax
import jax.numpy as jnp
from jax.experimental import pallas as pl
from jax.experimental.pallas import tpu as pltpu

EPS = 1e-5
SLOPE = 0.2


def _leaky(v):
    # leaky_relu(v, 0.2) == max(v, 0.2*v) for slope in (0,1): one mul + one max.
    return jnp.maximum(v, SLOPE * v)


def fused_res_blocks_kernel(x_ref, mask_ref, w1_ref, w2_ref, w3_ref,
                            pc4_ref, pc_ref, out_ref, *, W):
    """grid=(num_blocks,): one Res_block per grid step.

    The activation is carried between steps in the VMEM-resident output block
    (its BlockSpec index is constant across the grid)."""
    b = pl.program_id(0)
    C, NHW = out_ref.shape

    # Step 0: seed the carried activation with the kernel input.
    @pl.when(b == 0)
    def _():
        out_ref[...] = x_ref[...]

    xin = out_ref[...]                                        # (C, NHW) f32

    # ---- conv1: 1x1 (C -> C4p) + leaky_relu  [bf16 MXU, f32 accumulate] ----
    h1 = jnp.dot(w1_ref[...], xin.astype(jnp.bfloat16),
                 preferred_element_type=jnp.float32)          # (C4p, NHW)
    v1 = h1 + pc4_ref[:, 0:1]                                 # + b1
    h1 = _leaky(v1)

    # ---- conv2: 3x3 pad=1 (C4p -> C4p) as ONE matmul over 9 stacked taps ---
    # tap k = (dh+1)*3 + (dw+1) matches torch's (kh, kw) ordering.
    taps = []
    k = 0
    for dh in (-1, 0, 1):
        for dw in (-1, 0, 1):
            o = dh * W + dw                                   # lane offset of tap
            if o == 0:
                taps.append(h1)                               # center tap: mask == 1
            else:
                shifted = pltpu.roll(h1, shift=(-o) % NHW, axis=1)
                taps.append(shifted * mask_ref[k:k + 1, :])   # zero wrap-around
            k += 1
    stacked = jnp.concatenate(taps, axis=0)                   # (9*C4p, NHW) f32
    h2 = jnp.dot(w2_ref[...], stacked.astype(jnp.bfloat16),
                 preferred_element_type=jnp.float32)          # (C4p, NHW)
    v2 = h2 + pc4_ref[:, 1:2]                                 # + b2
    h2 = _leaky(v2)

    # ---- conv3: 1x1 (C4p -> C) + residual ----------------------------------
    y = jnp.dot(w3_ref[...], h2.astype(jnp.bfloat16),
                preferred_element_type=jnp.float32)           # (C, NHW)
    y = y + pc_ref[:, 0:1] + xin                              # + b3 + residual

    # ---- BatchNorm2d (training-mode batch stats) folded to per-channel affine
    inv_n = 1.0 / NHW
    mean = jnp.sum(y, axis=1, keepdims=True) * inv_n          # (C, 1)
    msq = jnp.sum(y * y, axis=1, keepdims=True) * inv_n
    var = msq - mean * mean
    scale = pc_ref[:, 1:2] * jax.lax.rsqrt(var + EPS)         # gamma / std
    bias = pc_ref[:, 2:3] - mean * scale                      # beta - mean*scale
    out_ref[...] = _leaky(y * scale + bias)


def _build_conv_masks(N, H, W):
    """(9, N*H*W) float mask: 1 where the (dh, dw) tap stays inside the image."""
    flat = jnp.arange(N * H * W, dtype=jnp.int32)
    hh = (flat // W) % H
    ww = flat % W
    rows = []
    for dh in (-1, 0, 1):
        for dw in (-1, 0, 1):
            rows.append((hh + dh >= 0) & (hh + dh < H) &
                        (ww + dw >= 0) & (ww + dw < W))
    return jnp.stack(rows, axis=0).astype(jnp.float32)


def init_res_block_params(key, C):
    """Deterministic synthetic parameters in torch Conv2d/BatchNorm2d shapes."""
    C4 = C // 4
    k1, k2, k3, k4, k5, k6 = jax.random.split(key, 6)
    return {
        "w1": 0.1 * jax.random.normal(k1, (C4, C), jnp.float32),         # (O,I) of (O,I,1,1)
        "b1": 0.1 * jax.random.normal(k2, (C4,), jnp.float32),
        "w2": 0.1 * jax.random.normal(k3, (C4, C4, 3, 3), jnp.float32),  # torch OIHW
        "b2": 0.1 * jax.random.normal(k4, (C4,), jnp.float32),
        "w3": 0.1 * jax.random.normal(k5, (C, C4), jnp.float32),         # (O,I) of (O,I,1,1)
        "b3": 0.1 * jax.random.normal(k6, (C,), jnp.float32),
        "gamma": jnp.ones((C,), jnp.float32),                            # BN defaults
        "beta": jnp.zeros((C,), jnp.float32),
    }


def pack_params(params_list):
    """Stack per-block params on a leading dim, zero-pad C4 -> C4p (multiple of
    8 sublanes), flatten the 3x3 taps to (C4p, 9*C4p), cast MXU weights to bf16,
    and pack small per-channel params into two refs per block."""
    C4, C = params_list[0]["w1"].shape
    C4p = max(8, -(-C4 // 8) * 8)
    pad4 = C4p - C4
    w1s, w2s, w3s, pc4s, pcs = [], [], [], [], []
    for p in params_list:
        w1 = jnp.pad(p["w1"], ((0, pad4), (0, 0)))                        # (C4p, C)
        # torch (O,I,kh,kw) -> (O,kh,kw,I) -> pad O,I -> (C4p, 9*C4p);
        # tap k = kh*3+kw corresponds to dh = kh-1, dw = kw-1 (padding=1).
        w2 = jnp.transpose(p["w2"], (0, 2, 3, 1))
        w2 = jnp.pad(w2, ((0, pad4), (0, 0), (0, 0), (0, pad4)))
        w2 = w2.reshape(C4p, 9 * C4p)
        w3 = jnp.pad(p["w3"], ((0, 0), (0, pad4)))                        # (C, C4p)
        b1 = jnp.pad(p["b1"], (0, pad4))
        b2 = jnp.pad(p["b2"], (0, pad4))
        w1s.append(w1.astype(jnp.bfloat16))
        w2s.append(w2.astype(jnp.bfloat16))
        w3s.append(w3.astype(jnp.bfloat16))
        pc4s.append(jnp.stack([b1, b2], axis=1))                          # (C4p, 2)
        pcs.append(jnp.stack([p["b3"], p["gamma"], p["beta"]], axis=1))   # (C, 3)
    return (jnp.stack(w1s), jnp.stack(w2s), jnp.stack(w3s),
            jnp.stack(pc4s), jnp.stack(pcs))


@jax.jit
def build_res_block_forward(x_nchw, packed):
    """x_nchw: (N, C, H, W) f32 -> (N, C, H, W) f32 through 4 fused Res_blocks."""
    N, C, H, W = x_nchw.shape
    NHW = N * H * W
    w1s, w2s, w3s, pc4s, pcs = packed
    num_blocks, C4p, _ = w1s.shape

    x2d = jnp.transpose(x_nchw, (1, 0, 2, 3)).reshape(C, NHW)   # glue layout transform
    mask = _build_conv_masks(N, H, W)

    kernel = functools.partial(fused_res_blocks_kernel, W=W)
    out2d = pl.pallas_call(
        kernel,
        out_shape=jax.ShapeDtypeStruct((C, NHW), jnp.float32),
        grid_spec=pltpu.PrefetchScalarGridSpec(
            num_scalar_prefetch=0,
            grid=(num_blocks,),
            in_specs=[
                pl.BlockSpec((C, NHW), lambda b: (0, 0)),              # x (VMEM-resident)
                pl.BlockSpec((9, NHW), lambda b: (0, 0)),              # shared tap masks
                pl.BlockSpec((None, C4p, C), lambda b: (b, 0, 0)),     # w1 of block b
                pl.BlockSpec((None, C4p, 9 * C4p), lambda b: (b, 0, 0)),  # w2 (flattened taps)
                pl.BlockSpec((None, C, C4p), lambda b: (b, 0, 0)),     # w3
                pl.BlockSpec((None, C4p, 2), lambda b: (b, 0, 0)),     # [b1 | b2]
                pl.BlockSpec((None, C, 3), lambda b: (b, 0, 0)),       # [b3 | gamma | beta]
            ],
            out_specs=pl.BlockSpec((C, NHW), lambda b: (0, 0)),        # carried activation
        ),
        compiler_params=pltpu.CompilerParams(
            dimension_semantics=("arbitrary",)),
    )(x2d, mask, w1s, w2s, w3s, pc4s, pcs)
    return jnp.transpose(out2d.reshape(C, N, H, W), (1, 0, 2, 3))


def _ref_forward(x, params_list):
    """Pure-JAX reference (full f32) matching the torch module."""
    def leaky(v):
        return jnp.where(v >= 0, v, SLOPE * v)

    def conv(h, w, b, padding):
        y = jax.lax.conv_general_dilated(
            h, w, window_strides=(1, 1), padding=padding,
            dimension_numbers=("NCHW", "OIHW", "NCHW"),
            precision=jax.lax.Precision.HIGHEST)
        return y + b.reshape(1, -1, 1, 1)

    for p in params_list:
        C4, C = p["w1"].shape
        xin = x
        h = leaky(conv(x, p["w1"].reshape(C4, C, 1, 1), p["b1"], "VALID"))
        h = leaky(conv(h, p["w2"], p["b2"], [(1, 1), (1, 1)]))
        y = conv(h, p["w3"].reshape(C, C4, 1, 1), p["b3"], "VALID") + xin
        mean = y.mean(axis=(0, 2, 3), keepdims=True)
        var = ((y - mean) ** 2).mean(axis=(0, 2, 3), keepdims=True)
        y = (y - mean) * jax.lax.rsqrt(var + EPS)
        y = p["gamma"].reshape(1, -1, 1, 1) * y + p["beta"].reshape(1, -1, 1, 1)
        x = leaky(y)
    return x


if __name__ == "__main__":
    N, C, H, W = 2, 8, 16, 16          # in_channels must be divisible by 4
    key = jax.random.PRNGKey(0)
    kx, kp = jax.random.split(key)
    x = jax.random.normal(kx, (N, C, H, W), jnp.float32)

    params_list = [init_res_block_params(k, C) for k in jax.random.split(kp, 4)]
    packed = pack_params(params_list)

    out = build_res_block_forward(x, packed)
    out = jax.block_until_ready(out)
    assert out.shape == (N, C, H, W) and out.dtype == jnp.float32

    ref = _ref_forward(x, params_list)
    err = float(jnp.max(jnp.abs(out - ref)))
    assert err < 0.15, f"max abs error vs reference: {err}"
    print("KERNEL_OK")
</pallas_src>

<mosaic_0001>
module attributes {stable_mosaic.version = 11 : i64} {
  func.func @fused_res_blocks_kernel(%arg0: i32, %arg1: memref<8x512xf32, #tpu.memory_space<vmem>>, %arg2: memref<9x512xf32, #tpu.memory_space<vmem>>, %arg3: memref<1x8x8xbf16, #tpu.memory_space<vmem>>, %arg4: memref<1x8x72xbf16, #tpu.memory_space<vmem>>, %arg5: memref<1x8x8xbf16, #tpu.memory_space<vmem>>, %arg6: memref<1x8x2xf32, #tpu.memory_space<vmem>>, %arg7: memref<1x8x3xf32, #tpu.memory_space<vmem>>, %arg8: memref<8x512xf32, #tpu.memory_space<vmem>>) attributes {dimension_semantics = [#tpu.dimension_semantics<arbitrary>], iteration_bounds = array<i64: 4>, scalar_prefetch = 0 : i64, scratch_operands = 0 : i64, tpu.core_type = #tpu.core_type<tc>, window_params = [{pipeline_mode = #tpu.pipeline_mode<synchronous>, transform_indices = @transform_0, window_bounds = array<i64: 8, 512>}, {pipeline_mode = #tpu.pipeline_mode<synchronous>, transform_indices = @transform_1, window_bounds = array<i64: 9, 512>}, {transform_indices = @transform_2, window_bounds = array<i64: 1, 8, 8>}, {transform_indices = @transform_3, window_bounds = array<i64: 1, 8, 72>}, {transform_indices = @transform_4, window_bounds = array<i64: 1, 8, 8>}, {transform_indices = @transform_5, window_bounds = array<i64: 1, 8, 2>}, {transform_indices = @transform_6, window_bounds = array<i64: 1, 8, 3>}, {pipeline_mode = #tpu.pipeline_mode<synchronous>, transform_indices = @transform_7, window_bounds = array<i64: 8, 512>}]} {
    %c0_i32 = arith.constant 0 : i32
    %0 = arith.cmpi eq, %arg0, %c0_i32 : i32
    %1 = arith.extui %0 : i1 to i32
    %c0_i32_0 = arith.constant 0 : i32
    %2 = arith.cmpi ne, %1, %c0_i32_0 : i32
    scf.if %2 {
      %c0_47 = arith.constant 0 : index
      %c0_48 = arith.constant 0 : index
      %97 = vector.load %arg1[%c0_47, %c0_48] : memref<8x512xf32, #tpu.memory_space<vmem>>, vector<8x512xf32>
      %c0_49 = arith.constant 0 : index
      %c0_50 = arith.constant 0 : index
      %98 = vector.load %arg8[%c0_49, %c0_50] : memref<8x512xf32, #tpu.memory_space<vmem>>, vector<8x512xf32>
      tpu.vector_store %arg8[%c0_49, %c0_50], %97 {strides = array<i32>} : memref<8x512xf32, #tpu.memory_space<vmem>>, vector<8x512xf32>,
    } else {
    }
    %c0 = arith.constant 0 : index
    %c0_1 = arith.constant 0 : index
    %3 = vector.load %arg8[%c0, %c0_1] : memref<8x512xf32, #tpu.memory_space<vmem>>, vector<8x512xf32>
    %c0_2 = arith.constant 0 : index
    %c0_3 = arith.constant 0 : index
    %c0_4 = arith.constant 0 : index
    %4 = vector.load %arg3[%c0_2, %c0_3, %c0_4] : memref<1x8x8xbf16, #tpu.memory_space<vmem>>, vector<1x8x8xbf16>
    %5 = vector.shape_cast %4 : vector<1x8x8xbf16> to vector<8x8xbf16>
    %6 = arith.truncf %3 : vector<8x512xf32> to vector<8x512xbf16>
    %cst = arith.constant dense<0.000000e+00> : vector<8x512xf32>
    %7 = tpu.matmul %5, %6, %cst {dimension_numbers = #tpu.dot_dimension_numbers<[1], [0], [0], [1], [0, 0, 1, 1], [], []>} : vector<8x8xbf16>, vector<8x512xbf16>, vector<8x512xf32> -> vector<8x512xf32>
    %c0_5 = arith.constant 0 : index
    %c0_6 = arith.constant 0 : index
    %c0_7 = arith.constant 0 : index
    %8 = vector.load %arg6[%c0_5, %c0_6, %c0_7] : memref<1x8x2xf32, #tpu.memory_space<vmem>>, vector<1x8x1xf32>
    %9 = vector.shape_cast %8 : vector<1x8x1xf32> to vector<8x1xf32>
    %10 = vector.broadcast %9 : vector<8x1xf32> to vector<8x512xf32>
    %11 = arith.addf %7, %10 : vector<8x512xf32>
    %cst_8 = arith.constant 2.000000e-01 : f32
    %12 = vector.broadcast %cst_8 : f32 to vector<8x512xf32>
    %13 = arith.mulf %12, %11 : vector<8x512xf32>
    %14 = arith.maximumf %11, %13 : vector<8x512xf32>
    %c17_i32 = arith.constant 17 : i32
    %15 = tpu.dynamic_rotate %14 by %c17_i32 dim 1 : vector<8x512xf32>, i32 -> vector<8x512xf32>
    %c0_9 = arith.constant 0 : index
    %c0_10 = arith.constant 0 : index
    %16 = vector.load %arg2[%c0_9, %c0_10] : memref<9x512xf32, #tpu.memory_space<vmem>>, vector<1x512xf32>
    %17 = vector.broadcast %16 : vector<1x512xf32> to vector<8x512xf32>
    %18 = arith.mulf %15, %17 : vector<8x512xf32>
    %c16_i32 = arith.constant 16 : i32
    %19 = tpu.dynamic_rotate %14 by %c16_i32 dim 1 : vector<8x512xf32>, i32 -> vector<8x512xf32>
    %c1 = arith.constant 1 : index
    %c0_11 = arith.constant 0 : index
    %20 = vector.load %arg2[%c1, %c0_11] : memref<9x512xf32, #tpu.memory_space<vmem>>, vector<1x512xf32>
    %21 = vector.broadcast %20 : vector<1x512xf32> to vector<8x512xf32>
    %22 = arith.mulf %19, %21 : vector<8x512xf32>
    %c15_i32 = arith.constant 15 : i32
    %23 = tpu.dynamic_rotate %14 by %c15_i32 dim 1 : vector<8x512xf32>, i32 -> vector<8x512xf32>
    %c2 = arith.constant 2 : index
    %c0_12 = arith.constant 0 : index
    %24 = vector.load %arg2[%c2, %c0_12] : memref<9x512xf32, #tpu.memory_space<vmem>>, vector<1x512xf32>
    %25 = vector.broadcast %24 : vector<1x512xf32> to vector<8x512xf32>
    %26 = arith.mulf %23, %25 : vector<8x512xf32>
    %c1_i32 = arith.constant 1 : i32
    %27 = tpu.dynamic_rotate %14 by %c1_i32 dim 1 : vector<8x512xf32>, i32 -> vector<8x512xf32>
    %c3 = arith.constant 3 : index
    %c0_13 = arith.constant 0 : index
    %28 = vector.load %arg2[%c3, %c0_13] : memref<9x512xf32, #tpu.memory_space<vmem>>, vector<1x512xf32>
    %29 = vector.broadcast %28 : vector<1x512xf32> to vector<8x512xf32>
    %30 = arith.mulf %27, %29 : vector<8x512xf32>
    %c511_i32 = arith.constant 511 : i32
    %31 = tpu.dynamic_rotate %14 by %c511_i32 dim 1 : vector<8x512xf32>, i32 -> vector<8x512xf32>
    %c5 = arith.constant 5 : index
    %c0_14 = arith.constant 0 : index
    %32 = vector.load %arg2[%c5, %c0_14] : memref<9x512xf32, #tpu.memory_space<vmem>>, vector<1x512xf32>
    %33 = vector.broadcast %32 : vector<1x512xf32> to vector<8x512xf32>
    %34 = arith.mulf %31, %33 : vector<8x512xf32>
    %c497_i32 = arith.constant 497 : i32
    %35 = tpu.dynamic_rotate %14 by %c497_i32 dim 1 : vector<8x512xf32>, i32 -> vector<8x512xf32>
    %c6 = arith.constant 6 : index
    %c0_15 = arith.constant 0 : index
    %36 = vector.load %arg2[%c6, %c0_15] : memref<9x512xf32, #tpu.memory_space<vmem>>, vector<1x512xf32>
    %37 = vector.broadcast %36 : vector<1x512xf32> to vector<8x512xf32>
    %38 = arith.mulf %35, %37 : vector<8x512xf32>
    %c496_i32 = arith.constant 496 : i32
    %39 = tpu.dynamic_rotate %14 by %c496_i32 dim 1 : vector<8x512xf32>, i32 -> vector<8x512xf32>
    %c7 = arith.constant 7 : index
    %c0_16 = arith.constant 0 : index
    %40 = vector.load %arg2[%c7, %c0_16] : memref<9x512xf32, #tpu.memory_space<vmem>>, vector<1x512xf32>
    %41 = vector.broadcast %40 : vector<1x512xf32> to vector<8x512xf32>
    %42 = arith.mulf %39, %41 : vector<8x512xf32>
    %c495_i32 = arith.constant 495 : i32
    %43 = tpu.dynamic_rotate %14 by %c495_i32 dim 1 : vector<8x512xf32>, i32 -> vector<8x512xf32>
    %c8 = arith.constant 8 : index
    %c0_17 = arith.constant 0 : index
    %44 = vector.load %arg2[%c8, %c0_17] : memref<9x512xf32, #tpu.memory_space<vmem>>, vector<1x512xf32>
    %45 = vector.broadcast %44 : vector<1x512xf32> to vector<8x512xf32>
    %46 = arith.mulf %43, %45 : vector<8x512xf32>
    %47 = tpu.concatenate %18, %22, %26, %30, %14, %34, %38, %42, %46 in 0 : vector<8x512xf32>, vector<8x512xf32>, vector<8x512xf32>, vector<8x512xf32>, vector<8x512xf32>, vector<8x512xf32>, vector<8x512xf32>, vector<8x512xf32>, vector<8x512xf32> -> vector<72x512xf32>
    %c0_18 = arith.constant 0 : index
    %c0_19 = arith.constant 0 : index
    %c0_20 = arith.constant 0 : index
    %48 = vector.load %arg4[%c0_18, %c0_19, %c0_20] : memref<1x8x72xbf16, #tpu.memory_space<vmem>>, vector<1x8x72xbf16>
    %49 = vector.shape_cast %48 : vector<1x8x72xbf16> to vector<8x72xbf16>
    %50 = arith.truncf %47 : vector<72x512xf32> to vector<72x512xbf16>
    %cst_21 = arith.constant dense<0.000000e+00> : vector<8x512xf32>
    %51 = tpu.matmul %49, %50, %cst_21 {dimension_numbers = #tpu.dot_dimension_numbers<[1], [0], [0], [1], [0, 0, 1, 1], [], []>} : vector<8x72xbf16>, vector<72x512xbf16>, vector<8x512xf32> -> vector<8x512xf32>
    %c0_22 = arith.constant 0 : index
    %c0_23 = arith.constant 0 : index
    %c1_24 = arith.constant 1 : index
    %52 = vector.load %arg6[%c0_22, %c0_23, %c1_24] : memref<1x8x2xf32, #tpu.memory_space<vmem>>, vector<1x8x1xf32>
    %53 = vector.shape_cast %52 : vector<1x8x1xf32> to vector<8x1xf32>
    %54 = vector.broadcast %53 : vector<8x1xf32> to vector<8x512xf32>
    %55 = arith.addf %51, %54 : vector<8x512xf32>
    %cst_25 = arith.constant 2.000000e-01 : f32
    %56 = vector.broadcast %cst_25 : f32 to vector<8x512xf32>
    %57 = arith.mulf %56, %55 : vector<8x512xf32>
    %58 = arith.maximumf %55, %57 : vector<8x512xf32>
    %c0_26 = arith.constant 0 : index
    %c0_27 = arith.constant 0 : index
    %c0_28 = arith.constant 0 : index
    %59 = vector.load %arg5[%c0_26, %c0_27, %c0_28] : memref<1x8x8xbf16, #tpu.memory_space<vmem>>, vector<1x8x8xbf16>
    %60 = vector.shape_cast %59 : vector<1x8x8xbf16> to vector<8x8xbf16>
    %61 = arith.truncf %58 : vector<8x512xf32> to vector<8x512xbf16>
    %cst_29 = arith.constant dense<0.000000e+00> : vector<8x512xf32>
    %62 = tpu.matmul %60, %61, %cst_29 {dimension_numbers = #tpu.dot_dimension_numbers<[1], [0], [0], [1], [0, 0, 1, 1], [], []>} : vector<8x8xbf16>, vector<8x512xbf16>, vector<8x512xf32> -> vector<8x512xf32>
    %c0_30 = arith.constant 0 : index
    %c0_31 = arith.constant 0 : index
    %c0_32 = arith.constant 0 : index
    %63 = vector.load %arg7[%c0_30, %c0_31, %c0_32] : memref<1x8x3xf32, #tpu.memory_space<vmem>>, vector<1x8x1xf32>
    %64 = vector.shape_cast %63 : vector<1x8x1xf32> to vector<8x1xf32>
    %65 = vector.broadcast %64 : vector<8x1xf32> to vector<8x512xf32>
    %66 = arith.addf %62, %65 : vector<8x512xf32>
    %67 = arith.addf %66, %3 : vector<8x512xf32>
    %cst_33 = arith.constant dense<0.000000e+00> : vector<8xf32>
    %68 = vector.multi_reduction <add>, %67, %cst_33 [1] : vector<8x512xf32> to vector<8xf32>
    %69 = vector.shape_cast %68 : vector<8xf32> to vector<8x1xf32>
    %cst_34 = arith.constant 0.001953125 : f32
    %70 = vector.broadcast %cst_34 : f32 to vector<8x1xf32>
    %71 = arith.mulf %69, %70 : vector<8x1xf32>
    %72 = arith.mulf %67, %67 : vector<8x512xf32>
    %cst_35 = arith.constant dense<0.000000e+00> : vector<8xf32>
    %73 = vector.multi_reduction <add>, %72, %cst_35 [1] : vector<8x512xf32> to vector<8xf32>
    %74 = vector.shape_cast %73 : vector<8xf32> to vector<8x1xf32>
    %cst_36 = arith.constant 0.001953125 : f32
    %75 = vector.broadcast %cst_36 : f32 to vector<8x1xf32>
    %76 = arith.mulf %74, %75 : vector<8x1xf32>
    %77 = arith.mulf %71, %71 : vector<8x1xf32>
    %78 = arith.subf %76, %77 : vector<8x1xf32>
    %c0_37 = arith.constant 0 : index
    %c0_38 = arith.constant 0 : index
    %c1_39 = arith.constant 1 : index
    %79 = vector.load %arg7[%c0_37, %c0_38, %c1_39] : memref<1x8x3xf32, #tpu.memory_space<vmem>>, vector<1x8x1xf32>
    %80 = vector.shape_cast %79 : vector<1x8x1xf32> to vector<8x1xf32>
    %cst_40 = arith.constant 9.99999974E-6 : f32
    %81 = vector.broadcast %cst_40 : f32 to vector<8x1xf32>
    %82 = arith.addf %78, %81 : vector<8x1xf32>
    %83 = math.rsqrt %82 : vector<8x1xf32>
    %84 = arith.mulf %80, %83 : vector<8x1xf32>
    %c0_41 = arith.constant 0 : index
    %c0_42 = arith.constant 0 : index
    %c2_43 = arith.constant 2 : index
    %85 = vector.load %arg7[%c0_41, %c0_42, %c2_43] : memref<1x8x3xf32, #tpu.memory_space<vmem>>, vector<1x8x1xf32>
    %86 = vector.shape_cast %85 : vector<1x8x1xf32> to vector<8x1xf32>
    %87 = arith.mulf %71, %84 : vector<8x1xf32>
    %88 = arith.subf %86, %87 : vector<8x1xf32>
    %89 = vector.broadcast %84 : vector<8x1xf32> to vector<8x512xf32>
    %90 = arith.mulf %67, %89 : vector<8x512xf32>
    %91 = vector.broadcast %88 : vector<8x1xf32> to vector<8x512xf32>
    %92 = arith.addf %90, %91 : vector<8x512xf32>
    %cst_44 = arith.constant 2.000000e-01 : f32
    %93 = vector.broadcast %cst_44 : f32 to vector<8x512xf32>
    %94 = arith.mulf %93, %92 : vector<8x512xf32>
    %95 = arith.maximumf %92, %94 : vector<8x512xf32>
    %c0_45 = arith.constant 0 : index
    %c0_46 = arith.constant 0 : index
    %96 = vector.load %arg8[%c0_45, %c0_46] : memref<8x512xf32, #tpu.memory_space<vmem>>, vector<8x512xf32>
    tpu.vector_store %arg8[%c0_45, %c0_46], %95 {strides = array<i32>} : memref<8x512xf32, #tpu.memory_space<vmem>>, vector<8x512xf32>,
    return
  }
  func.func @transform_0(%arg0: i32) -> (i32, i32) {
    %c0_i32 = arith.constant 0 : i32
    %c0_i32_0 = arith.constant 0 : i32
    %c0_i32_1 = arith.constant 0 : i32
    return %c0_i32, %c0_i32_0 : i32, i32
  }
  func.func @transform_1(%arg0: i32) -> (i32, i32) {
    %c0_i32 = arith.constant 0 : i32
    %c0_i32_0 = arith.constant 0 : i32
    %c0_i32_1 = arith.constant 0 : i32
    return %c0_i32, %c0_i32_0 : i32, i32
  }
  func.func @transform_2(%arg0: i32) -> (i32, i32, i32) {
    %c0_i32 = arith.constant 0 : i32
    %c0_i32_0 = arith.constant 0 : i32
    %c0_i32_1 = arith.constant 0 : i32
    return %arg0, %c0_i32, %c0_i32_0 : i32, i32, i32
  }
  func.func @transform_3(%arg0: i32) -> (i32, i32, i32) {
    %c0_i32 = arith.constant 0 : i32
    %c0_i32_0 = arith.constant 0 : i32
    %c0_i32_1 = arith.constant 0 : i32
    return %arg0, %c0_i32, %c0_i32_0 : i32, i32, i32
  }
  func.func @transform_4(%arg0: i32) -> (i32, i32, i32) {
    %c0_i32 = arith.constant 0 : i32
    %c0_i32_0 = arith.constant 0 : i32
    %c0_i32_1 = arith.constant 0 : i32
    return %arg0, %c0_i32, %c0_i32_0 : i32, i32, i32
  }
  func.func @transform_5(%arg0: i32) -> (i32, i32, i32) {
    %c0_i32 = arith.constant 0 : i32
    %c0_i32_0 = arith.constant 0 : i32
    %c0_i32_1 = arith.constant 0 : i32
    return %arg0, %c0_i32, %c0_i32_0 : i32, i32, i32
  }
  func.func @transform_6(%arg0: i32) -> (i32, i32, i32) {
    %c0_i32 = arith.constant 0 : i32
    %c0_i32_0 = arith.constant 0 : i32
    %c0_i32_1 = arith.constant 0 : i32
    return %arg0, %c0_i32, %c0_i32_0 : i32, i32, i32
  }
  func.func @transform_7(%arg0: i32) -> (i32, i32) {
    %c0_i32 = arith.constant 0 : i32
    %c0_i32_0 = arith.constant 0 : i32
    %c0_i32_1 = arith.constant 0 : i32
    return %c0_i32, %c0_i32_0 : i32, i32
  }
}

</mosaic_0001>

<llo_original>
// kernel: build_res_block_forward.1
$region0: #{build_res_block_forward.1}
  #allocation0 [shape = 'u32[]', space=smem, size = 0x4, offset = 0x4, fixed_abs, tag = 'smem constant byte address 0x4 - core index']
  #allocation1 [shape = 'u32[144,128]{1,0:T(1,128)}', space=vmem, size = 0x12000, scoped, tag = 'internal scratch']
  %s0 = inlined_call_operand.vmem [shape: f32[8,512], index: 0, kind: input, shape index: {}]
  %s1 = inlined_call_operand.vmem [shape: f32[9,512], index: 1, kind: input, shape index: {}]
  %s2 = inlined_call_operand.vmem [shape: bf16[4,8,8], index: 2, kind: input, shape index: {}]
  %s3 = inlined_call_operand.vmem [shape: bf16[4,8,72], index: 3, kind: input, shape index: {}]
  %s4 = inlined_call_operand.vmem [shape: bf16[4,8,8], index: 4, kind: input, shape index: {}]
  %s5 = inlined_call_operand.vmem [shape: f32[4,8,2], index: 5, kind: input, shape index: {}]
  %s6 = inlined_call_operand.vmem [shape: f32[4,8,3], index: 6, kind: input, shape index: {}]
  %s7 = inlined_call_operand.vmem [shape: f32[8,512], index: 7, kind: output, shape index: {}]
  %s8 = sld [smem:[#allocation0]]
  $region65: #{build_res_block_forward.1} parent=0
    _
  %s10 = ssub.s32 1, %s8
  %s11 = scalar_select 0, %s10, %s8
  loop: start=0, step=1, limit=6
  $region2: #{build_res_block_forward.1} parent=0 // loop_pre_header
    _
  $region3: #{build_res_block_forward.1} parent=0 // loop_header
    %s13 = sphi 0, %s17
    %p14 = scmp.ge.s32.totalorder %s13, 6
    %s21 = sphi 0, %s21
    %s23 = sphi 0, %s21
    %s24 = sphi 0, %s23
    %s38 = sphi 0, %s24
    %s42 = sphi 0, %s42
    %s44 = sphi 0, %s42
    %s45 = sphi 0, %s44
    %s59 = sphi 0, %s45
    %s65 = sphi 0, %s67
    %s68 = sphi 0, %s65
    %s69 = sphi 0, %s68
    %s85 = sphi 0, %s69
    %s91 = sphi 0, %s93
    %s94 = sphi 0, %s91
    %s95 = sphi 0, %s94
    %s111 = sphi 0, %s95
    %s117 = sphi 0, %s119
    %s120 = sphi 0, %s117
    %s121 = sphi 0, %s120
    %s137 = sphi 0, %s121
    %s143 = sphi 0, %s145
    %s146 = sphi 0, %s143
    %s147 = sphi 0, %s146
    %s163 = sphi 0, %s147
    %s169 = sphi 0, %s171
    %s172 = sphi 0, %s169
    %s173 = sphi 0, %s172
    %s189 = sphi 0, %s173
    %s193 = sphi 0, %s193
    %s195 = sphi 0, %s193
    %s196 = sphi 0, %s195
    %s210 = sphi 0, %s196
  $region4: #{build_res_block_forward.1} parent=0 // loop_header_branch
    %16 = sbr.rel (%p14) target = $region8
  $region5: #{build_res_block_forward.1} parent=0 // loop_body
    %s18 = ssub.s32 %s13, 1
    %s19 = ssub.s32 %s13, 2
    %s20 = sadd.s32 %s13, 1
    %s22 = sadd.s32 %s21, 1
    %p25 = scmp.eq.s32.totalorder %s13, 3
    %p26 = scmp.ne.s32.totalorder %s21, %s23
    %p27 = scmp.eq.s32.totalorder %s13, 0
    %p28 = por %p26, %p27
    %p29 = scmp.ne.s32.totalorder %s21, %s23
    %p30 = scmp.eq.s32.totalorder %s18, 3
    %p31 = por %p29, %p30
    %p32 = scmp.ne.s32.totalorder %s23, %s24
    %p33 = scmp.eq.s32.totalorder %s18, 0
    %p34 = por %p32, %p33
    %p35 = scmp.ne.s32.totalorder %s23, %s24
    %p36 = scmp.eq.s32.totalorder %s19, 3
    %p37 = por %p35, %p36
    %p39 = scmp.ne.s32.totalorder %s24, %s38
    %p40 = scmp.eq.s32.totalorder %s19, 0
    %p41 = por %p39, %p40
    %s43 = sadd.s32 %s42, 1
    %p46 = scmp.eq.s32.totalorder %s13, 3
    %p47 = scmp.ne.s32.totalorder %s42, %s44
    %p48 = scmp.eq.s32.totalorder %s13, 0
    %p49 = por %p47, %p48
    %p50 = scmp.ne.s32.totalorder %s42, %s44
    %p51 = scmp.eq.s32.totalorder %s18, 3
    %p52 = por %p50, %p51
    %p53 = scmp.ne.s32.totalorder %s44, %s45
    %p54 = scmp.eq.s32.totalorder %s18, 0
    %p55 = por %p53, %p54
    %p56 = scmp.ne.s32.totalorder %s44, %s45
    %p57 = scmp.eq.s32.totalorder %s19, 3
    %p58 = por %p56, %p57
    %p60 = scmp.ne.s32.totalorder %s45, %s59
    %p61 = scmp.eq.s32.totalorder %s19, 0
    %p62 = por %p60, %p61
    %s63 = ssub.s32 %s13, %s20
    %p64 = scmp.eq.s32.totalorder %s63, 0
    %s66 = sadd.s32 %s65, 1
    %s67 = scalar_select %p64, %s65, %s66
    %p70 = pneg %p64
    %p71 = scmp.eq.s32.totalorder %s13, 3
    %p72 = por %p70, %p71
    %p73 = scmp.ne.s32.totalorder %s65, %s68
    %p74 = scmp.eq.s32.totalorder %s13, 0
    %p75 = por %p73, %p74
    %p76 = scmp.ne.s32.totalorder %s65, %s68
    %p77 = scmp.eq.s32.totalorder %s18, 3
    %p78 = por %p76, %p77
    %p79 = scmp.ne.s32.totalorder %s68, %s69
    %p80 = scmp.eq.s32.totalorder %s18, 0
    %p81 = por %p79, %p80
    %p82 = scmp.ne.s32.totalorder %s68, %s69
    %p83 = scmp.eq.s32.totalorder %s19, 3
    %p84 = por %p82, %p83
    %p86 = scmp.ne.s32.totalorder %s69, %s85
    %p87 = scmp.eq.s32.totalorder %s19, 0
    %p88 = por %p86, %p87
    %s89 = ssub.s32 %s13, %s20
    %p90 = scmp.eq.s32.totalorder %s89, 0
    %s92 = sadd.s32 %s91, 1
    %s93 = scalar_select %p90, %s91, %s92
    %p96 = pneg %p90
    %p97 = scmp.eq.s32.totalorder %s13, 3
    %p98 = por %p96, %p97
    %p99 = scmp.ne.s32.totalorder %s91, %s94
    %p100 = scmp.eq.s32.totalorder %s13, 0
    %p101 = por %p99, %p100
    %p102 = scmp.ne.s32.totalorder %s91, %s94
    %p103 = scmp.eq.s32.totalorder %s18, 3
    %p104 = por %p102, %p103
    %p105 = scmp.ne.s32.totalorder %s94, %s95
    %p106 = scmp.eq.s32.totalorder %s18, 0
    %p107 = por %p105, %p106
    %p108 = scmp.ne.s32.totalorder %s94, %s95
    %p109 = scmp.eq.s32.totalorder %s19, 3
    %p110 = por %p108, %p109
    %p112 = scmp.ne.s32.totalorder %s95, %s111
    %p113 = scmp.eq.s32.totalorder %s19, 0
    %p114 = por %p112, %p113
    %s115 = ssub.s32 %s13, %s20
    %p116 = scmp.eq.s32.totalorder %s115, 0
    %s118 = sadd.s32 %s117, 1
    %s119 = scalar_select %p116, %s117, %s118
    %p122 = pneg %p116
    %p123 = scmp.eq.s32.totalorder %s13, 3
    %p124 = por %p122, %p123
    %p125 = scmp.ne.s32.totalorder %s117, %s120
    %p126 = scmp.eq.s32.totalorder %s13, 0
    %p127 = por %p125, %p126
    %p128 = scmp.ne.s32.totalorder %s117, %s120
    %p129 = scmp.eq.s32.totalorder %s18, 3
    %p130 = por %p128, %p129
    %p131 = scmp.ne.s32.totalorder %s120, %s121
    %p132 = scmp.eq.s32.totalorder %s18, 0
    %p133 = por %p131, %p132
    %p134 = scmp.ne.s32.totalorder %s120, %s121
    %p135 = scmp.eq.s32.totalorder %s19, 3
    %p136 = por %p134, %p135
    %p138 = scmp.ne.s32.totalorder %s121, %s137
    %p139 = scmp.eq.s32.totalorder %s19, 0
    %p140 = por %p138, %p139
    %s141 = ssub.s32 %s13, %s20
    %p142 = scmp.eq.s32.totalorder %s141, 0
    %s144 = sadd.s32 %s143, 1
    %s145 = scalar_select %p142, %s143, %s144
    %p148 = pneg %p142
    %p149 = scmp.eq.s32.totalorder %s13, 3
    %p150 = por %p148, %p149
    %p151 = scmp.ne.s32.totalorder %s143, %s146
    %p152 = scmp.eq.s32.totalorder %s13, 0
    %p153 = por %p151, %p152
    %p154 = scmp.ne.s32.totalorder %s143, %s146
    %p155 = scmp.eq.s32.totalorder %s18, 3
    %p156 = por %p154, %p155
    %p157 = scmp.ne.s32.totalorder %s146, %s147
    %p158 = scmp.eq.s32.totalorder %s18, 0
    %p159 = por %p157, %p158
    %p160 = scmp.ne.s32.totalorder %s146, %s147
    %p161 = scmp.eq.s32.totalorder %s19, 3
    %p162 = por %p160, %p161
    %p164 = scmp.ne.s32.totalorder %s147, %s163
    %p165 = scmp.eq.s32.totalorder %s19, 0
    %p166 = por %p164, %p165
    %s167 = ssub.s32 %s13, %s20
    %p168 = scmp.eq.s32.totalorder %s167, 0
    %s170 = sadd.s32 %s169, 1
    %s171 = scalar_select %p168, %s169, %s170
    %p174 = pneg %p168
    %p175 = scmp.eq.s32.totalorder %s13, 3
    %p176 = por %p174, %p175
    %p177 = scmp.ne.s32.totalorder %s169, %s172
    %p178 = scmp.eq.s32.totalorder %s13, 0
    %p179 = por %p177, %p178
    %p180 = scmp.ne.s32.totalorder %s169, %s172
    %p181 = scmp.eq.s32.totalorder %s18, 3
    %p182 = por %p180, %p181
    %p183 = scmp.ne.s32.totalorder %s172, %s173
    %p184 = scmp.eq.s32.totalorder %s18, 0
    %p185 = por %p183, %p184
    %p186 = scmp.ne.s32.totalorder %s172, %s173
    %p187 = scmp.eq.s32.totalorder %s19, 3
    %p188 = por %p186, %p187
    %p190 = scmp.ne.s32.totalorder %s173, %s189
    %p191 = scmp.eq.s32.totalorder %s19, 0
    %p192 = por %p190, %p191
    %s194 = sadd.s32 %s193, 1
    %p197 = scmp.eq.s32.totalorder %s13, 3
    %p198 = scmp.ne.s32.totalorder %s193, %s195
    %p199 = scmp.eq.s32.totalorder %s13, 0
    %p200 = por %p198, %p199
    %p201 = scmp.ne.s32.totalorder %s193, %s195
    %p202 = scmp.eq.s32.totalorder %s18, 3
    %p203 = por %p201, %p202
    %p204 = scmp.ne.s32.totalorder %s195, %s196
    %p205 = scmp.eq.s32.totalorder %s18, 0
    %p206 = por %p204, %p205
    %p207 = scmp.ne.s32.totalorder %s195, %s196
    %p208 = scmp.eq.s32.totalorder %s19, 3
    %p209 = por %p207, %p208
    %p211 = scmp.ne.s32.totalorder %s196, %s210
    %p212 = scmp.eq.s32.totalorder %s19, 0
    %p213 = por %p211, %p212
    %p214 = scmp.le.s32.totalorder 1, %s13
    %p215 = scmp.lt.s32.totalorder %s13, 5
    %p216 = pnand %p214, %p215
    %p217 = pneg %p216
    // Predicated region
    $region9: #{build_res_block_forward.1} parent=5 // pred_check
      _
    $region10: #{build_res_block_forward.1} parent=5 // pred_check_branch
      %219 = sbr.rel (%p216) target = $region12
    $region11: #{build_res_block_forward.1} parent=5 // pred_region
      %s220 = ssub.s32 %s13, 1
      // Predicated region
      $region13: #{build_res_block_forward.1} parent=11 // pred_check
        %p221 = pneg %p34
      $region14: #{build_res_block_forward.1} parent=11 // pred_check_branch
        %223 = sbr.rel (%p221) target = $region16
      $region15: #{build_res_block_forward.1} parent=11 // pred_region
        _
      $region16: #{build_res_block_forward.1} parent=11 // pred_fallthru
        _
      // Predicated region
      $region17: #{build_res_block_forward.1} parent=11 // pred_check
        %p224 = pneg %p55
      $region18: #{build_res_block_forward.1} parent=11 // pred_check_branch
        %226 = sbr.rel (%p224) target = $region20
      $region19: #{build_res_block_forward.1} parent=11 // pred_region
        _
      $region20: #{build_res_block_forward.1} parent=11 // pred_fallthru
        _
    $region12: #{build_res_block_forward.1} parent=5 // pred_fallthru
      _
    %p227 = scmp.lt.s32.totalorder %s13, 4
    // Predicated region
    $region21: #{build_res_block_forward.1} parent=5 // pred_check
      %p228 = pneg %p227
    $region22: #{build_res_block_forward.1} parent=5 // pred_check_branch
      %230 = sbr.rel (%p228) target = $region24
    $region23: #{build_res_block_forward.1} parent=5 // pred_region
      // Predicated region
      $region25: #{build_res_block_forward.1} parent=23 // pred_check
        %p231 = pneg %p75
      $region26: #{build_res_block_forward.1} parent=23 // pred_check_branch
        %233 = sbr.rel (%p231) target = $region28
      $region27: #{build_res_block_forward.1} parent=23 // pred_region
        %p234 = scmp.lt.s32.totalorder %s13, 3
        %s235 = scalar_select %p234, %s13, 3
        %s236 = smul.addr %s235, 4
        %s237 = scalar_lea.vmem %s2, %s236
      $region28: #{build_res_block_forward.1} parent=23 // pred_fallthru
        _
      // Predicated region
      $region29: #{build_res_block_forward.1} parent=23 // pred_check
        %p238 = pneg %p101
      $region30: #{build_res_block_forward.1} parent=23 // pred_check_branch
        %240 = sbr.rel (%p238) target = $region32
      $region31: #{build_res_block_forward.1} parent=23 // pred_region
        %p241 = scmp.lt.s32.totalorder %s13, 3
        %s242 = scalar_select %p241, %s13, 3
        %s243 = smul.addr %s242, 4
        %s244 = scalar_lea.vmem %s3, %s243
      $region32: #{build_res_block_forward.1} parent=23 // pred_fallthru
        _
      // Predicated region
      $region33: #{build_res_block_forward.1} parent=23 // pred_check
        %p245 = pneg %p127
      $region34: #{build_res_block_forward.1} parent=23 // pred_check_branch
        %247 = sbr.rel (%p245) target = $region36
      $region35: #{build_res_block_forward.1} parent=23 // pred_region
        %p248 = scmp.lt.s32.totalorder %s13, 3
        %s249 = scalar_select %p248, %s13, 3
        %s250 = smul.addr %s249, 4
        %s251 = scalar_lea.vmem %s4, %s250
      $region36: #{build_res_block_forward.1} parent=23 // pred_fallthru
        _
      // Predicated region
      $region37: #{build_res_block_forward.1} parent=23 // pred_check
        %p252 = pneg %p153
      $region38: #{build_res_block_forward.1} parent=23 // pred_check_branch
        %254 = sbr.rel (%p252) target = $region40
      $region39: #{build_res_block_forward.1} parent=23 // pred_region
        %p255 = scmp.lt.s32.totalorder %s13, 3
        %s256 = scalar_select %p255, %s13, 3
        %s257 = smul.addr %s256, 8
        %s258 = scalar_lea.vmem %s5, %s257
      $region40: #{build_res_block_forward.1} parent=23 // pred_fallthru
        _
      // Predicated region
      $region41: #{build_res_block_forward.1} parent=23 // pred_check
        %p259 = pneg %p179
      $region42: #{build_res_block_forward.1} parent=23 // pred_check_branch
        %261 = sbr.rel (%p259) target = $region44
      $region43: #{build_res_block_forward.1} parent=23 // pred_region
        %p262 = scmp.lt.s32.totalorder %s13, 3
        %s263 = scalar_select %p262, %s13, 3
        %s264 = smul.addr %s263, 8
        %s265 = scalar_lea.vmem %s6, %s264
      $region44: #{build_res_block_forward.1} parent=23 // pred_fallthru
        _
    $region24: #{build_res_block_forward.1} parent=5 // pred_fallthru
      _
    %p266 = scmp.le.s32.totalorder 1, %s13
    %p267 = scmp.lt.s32.totalorder %s13, 5
    %p268 = pnand %p266, %p267
    %p269 = pneg %p268
    // Predicated region
    $region45: #{build_res_block_forward.1} parent=5 // pred_check
      _
    $region46: #{build_res_block_forward.1} parent=5 // pred_check_branch
      %271 = sbr.rel (%p268) target = $region48
    $region47: #{build_res_block_forward.1} parent=5 // pred_region
      %s272 = ssub.s32 %s13, 1
      %p273 = pneg %p34
      %p274 = pneg %p31
      %p275 = pneg %p55
      %p276 = pneg %p52
      %p277 = scmp.lt.s32.totalorder %s18, 3
      %s278 = scalar_select %p277, %s18, 3
      %s279 = smul.addr %s278, 4
      %s280 = scalar_lea.vmem %s2, %s279
      %p281 = pneg %p81
      %p282 = pneg %p78
      %p283 = scmp.lt.s32.totalorder %s18, 3
      %s284 = scalar_select %p283, %s18, 3
      %s285 = smul.addr %s284, 4
      %s286 = scalar_lea.vmem %s3, %s285
      %p287 = pneg %p107
      %p288 = pneg %p104
      %p289 = scmp.lt.s32.totalorder %s18, 3
      %s290 = scalar_select %p289, %s18, 3
      %s291 = smul.addr %s290, 4
      %s292 = scalar_lea.vmem %s4, %s291
      %p293 = pneg %p133
      %p294 = pneg %p130
      %p295 = scmp.lt.s32.totalorder %s18, 3
      %s296 = scalar_select %p295, %s18, 3
      %s297 = smul.addr %s296, 8
      %s298 = scalar_lea.vmem %s5, %s297
      %p299 = pneg %p159
      %p300 = pneg %p156
      %p301 = scmp.lt.s32.totalorder %s18, 3
      %s302 = scalar_select %p301, %s18, 3
      %s303 = smul.addr %s302, 8
      %s304 = scalar_lea.vmem %s6, %s303
      %p305 = pneg %p185
      %p306 = pneg %p182
      %p307 = pneg %p206
      %p308 = pneg %p203
      %p309 = scmp.lt.s32.totalorder %s18, 3
      %s310 = scalar_select %p309, %s18, 3
      %s311 = smul.addr %s310, 4
      %s312 = scalar_lea.vmem %s2, %s311
      %p313 = scmp.lt.s32.totalorder %s18, 3
      %s314 = scalar_select %p313, %s18, 3
      %s315 = smul.addr %s314, 4
      %s316 = scalar_lea.vmem %s3, %s315
      %p317 = scmp.lt.s32.totalorder %s18, 3
      %s318 = scalar_select %p317, %s18, 3
      %s319 = smul.addr %s318, 4
      %s320 = scalar_lea.vmem %s4, %s319
      %p321 = scmp.lt.s32.totalorder %s18, 3
      %s322 = scalar_select %p321, %s18, 3
      %s323 = smul.addr %s322, 8
      %s324 = scalar_lea.vmem %s5, %s323
      %p325 = scmp.lt.s32.totalorder %s18, 3
      %s326 = scalar_select %p325, %s18, 3
      %s327 = smul.addr %s326, 8
      %s328 = scalar_lea.vmem %s6, %s327
      %p330 = scmp.eq.s32.totalorder %s18, 0
      // Predicated region
      $region49: #{build_res_block_forward.1} parent=47 // pred_check
        %p331 = pneg %p330
      $region50: #{build_res_block_forward.1} parent=47 // pred_check_branch
        %333 = sbr.rel (%p331) target = $region52
      $region51: #{build_res_block_forward.1} parent=47 // pred_region
        %v334 = vld [vmem:[%s0] sm:$0xff]
        %v335 = vld [vmem:[%s0 + $0x8] sm:$0xff]
        %v336 = vld [vmem:[%s0 + $0x10] sm:$0xff]
        %v337 = vld [vmem:[%s0 + $0x18] sm:$0xff]
        %338 = vst [vmem:[%s7] sm:$0xff] %v334
        %339 = vst [vmem:[%s7 + $0x8] sm:$0xff] %v335
        %340 = vst [vmem:[%s7 + $0x10] sm:$0xff] %v336
        %341 = vst [vmem:[%s7 + $0x18] sm:$0xff] %v337
      $region52: #{build_res_block_forward.1} parent=47 // pred_fallthru
        _
      %v342 = vld [vmem:[%s7] sm:$0xff]
      %v343 = vld [vmem:[%s7 + $0x8] sm:$0xff]
      %v344 = vld [vmem:[%s7 + $0x10] sm:$0xff]
      %v345 = vld [vmem:[%s7 + $0x18] sm:$0xff]
      %v346 = vld [vmem:[%s312] sm:$0xf]
      %v347 = vpack.c.bf16 %v342, %v342
      %v348 = vpack.c.bf16 %v343, %v343
      %v349 = vpack.c.bf16 %v344, %v344
      %v350 = vpack.c.bf16 %v345, %v345
      %v351 = vld [vmem:[%s324] sm:$0xff]
      %353 = vset.pattern.permute.xlu0 0
      %354 = vperm.xlu0 %353, %v351
      %v355 = vpop.permute.xlu0 %354
      %vm357 = vcmask 64512
      %v359 = vsel %vm357, %v346, 0
      %vm361 = vcmask 1043456
      %v363 = vsel %vm361, %v347, 0
      %v366 = vsel %vm361, %v348, 0
      %v369 = vsel %vm361, %v349, 0
      %v372 = vsel %vm361, %v350, 0
      %374 = vmatprep.subr.bf16.mxu0 %v366
      %375 = vmatpush1.bf16.msra.mxu0 %v363
      %376 = vmatprep.subr.bf16.mxu0 0
      %377 = vmatpush1.bf16.msra.mxu0 0
      %378 = vmatprep.subr.bf16.mxu0 0
      %379 = vmatpush1.bf16.msra.mxu0 0
      %380 = vmatprep.subr.bf16.mxu0 0
      %381 = vmatpush1.bf16.msra.mxu0 0
      %382 = vmatprep.subr.bf16.mxu0 0
      %383 = vmatpush1.bf16.msra.mxu0 0
      %384 = vmatprep.subr.bf16.mxu0 0
      %385 = vmatpush1.bf16.msra.mxu0 0
      %386 = vmatprep.subr.bf16.mxu0 0
      %387 = vmatpush1.bf16.msra.mxu0 0
      %388 = vmatprep.subr.bf16.mxu0 0
      %389 = vmatpush1.bf16.msra.mxu0 0
      %390 = vmatprep.subr.bf16.mxu0 0
      %391 = vmatpush1.bf16.msra.mxu0 0
      %392 = vmatprep.subr.bf16.mxu0 0
      %393 = vmatpush1.bf16.msra.mxu0 0
      %394 = vmatprep.subr.bf16.mxu0 0
      %395 = vmatpush1.bf16.msra.mxu0 0
      %396 = vmatprep.subr.bf16.mxu0 0
      %397 = vmatpush1.bf16.msra.mxu0 0
      %398 = vmatprep.subr.bf16.mxu0 0
      %399 = vmatpush1.bf16.msra.mxu0 0
      %400 = vmatprep.subr.bf16.mxu0 0
      %401 = vmatpush1.bf16.msra.mxu0 0
      %402 = vmatprep.subr.bf16.mxu0 0
      %403 = vmatpush1.bf16.msra.mxu0 0
      %404 = vmatprep.subr.bf16.mxu0 0
      %405 = vmatpush1.bf16.msra.mxu0 0
      %406 = vmatprep.mubr.bf16.mxu0 0
      %407 = vmatmul.mubr.bf16.gmra.mrb[0].mxu0 %v359
      %v408 = vpop.f32.mrb[0].mxu0
      %v409 = vadd.f32 %v355, %v408
      %v410 = vpop.f32.mrb[0].mxu0
      %v411 = vadd.f32 %v355, %v410
      %v412 = vpop.f32.mrb[0].mxu0
      %v413 = vpop.f32.mrb[0].mxu0
      %414 = vdwg.mxu0
      %415 = vmatprep.subr.bf16.mxu0 %v372
      %416 = vmatpush1.bf16.msra.mxu0 %v369
      %417 = vmatprep.subr.bf16.mxu0 0
      %418 = vmatpush1.bf16.msra.mxu0 0
      %419 = vmatprep.subr.bf16.mxu0 0
      %420 = vmatpush1.bf16.msra.mxu0 0
      %421 = vmatprep.subr.bf16.mxu0 0
      %422 = vmatpush1.bf16.msra.mxu0 0
      %423 = vmatprep.subr.bf16.mxu0 0
      %424 = vmatpush1.bf16.msra.mxu0 0
      %425 = vmatprep.subr.bf16.mxu0 0
      %426 = vmatpush1.bf16.msra.mxu0 0
      %427 = vmatprep.subr.bf16.mxu0 0
      %428 = vmatpush1.bf16.msra.mxu0 0
      %429 = vmatprep.subr.bf16.mxu0 0
      %430 = vmatpush1.bf16.msra.mxu0 0
      %431 = vmatprep.subr.bf16.mxu0 0
      %432 = vmatpush1.bf16.msra.mxu0 0
      %433 = vmatprep.subr.bf16.mxu0 0
      %434 = vmatpush1.bf16.msra.mxu0 0
      %435 = vmatprep.subr.bf16.mxu0 0
      %436 = vmatpush1.bf16.msra.mxu0 0
      %437 = vmatprep.subr.bf16.mxu0 0
      %438 = vmatpush1.bf16.msra.mxu0 0
      %439 = vmatprep.subr.bf16.mxu0 0
      %440 = vmatpush1.bf16.msra.mxu0 0
      %441 = vmatprep.subr.bf16.mxu0 0
      %442 = vmatpush1.bf16.msra.mxu0 0
      %443 = vmatprep.subr.bf16.mxu0 0
      %444 = vmatpush1.bf16.msra.mxu0 0
      %445 = vmatprep.subr.bf16.mxu0 0
      %446 = vmatpush1.bf16.msra.mxu0 0
      %447 = vmatprep.mubr.bf16.mxu0 0
      %448 = vmatmul.mubr.bf16.gmra.mrb[0].mxu0 %v359
      %v449 = vpop.f32.mrb[0].mxu0
      %v450 = vadd.f32 %v355, %v449
      %v451 = vpop.f32.mrb[0].mxu0
      %v452 = vadd.f32 %v355, %v451
      %v453 = vpop.f32.mrb[0].mxu0
      %v454 = vpop.f32.mrb[0].mxu0
      %455 = vdwg.mxu0
      %v456 = vmul.f32 %v409, 0.2
      %v457 = vmul.f32 %v411, 0.2
      %v458 = vmul.f32 %v450, 0.2
      %v459 = vmul.f32 %v452, 0.2
      %v460 = vmax.f32 %v409, %v456
      %v461 = vmax.f32 %v411, %v457
      %v462 = vmax.f32 %v450, %v458
      %v463 = vmax.f32 %v452, %v459
      %464 = vrot.lane.b32.xlu0 %v460, 17
      %v465 = vpop.permute.xlu0 %464
      %466 = vrot.lane.b32.xlu0 %v461, 17
      %v467 = vpop.permute.xlu0 %466
      %468 = vrot.lane.b32.xlu0 %v462, 17
      %v469 = vpop.permute.xlu0 %468
      %470 = vrot.lane.b32.xlu0 %v463, 17
      %v471 = vpop.permute.xlu0 %470
      %v472 = vlaneseq
      %v473 = vand.u32 %v472, 127
      %vm474 = vcmp.lt.s32.totalorder %v473, 17
      %v475 = vsel %vm474, %v469, %v471
      %v476 = vsel %vm474, %v467, %v469
      %v477 = vsel %vm474, %v465, %v467
      %v478 = vsel %vm474, %v471, %v465
      %v479 = vld [vmem:[%s1] ss:$8 sm:$0xf]
      %v481 = vlaneseq
      %v482 = vshrl.u32 %v481, 7
      %v483 = vsub.s32 0, %v482
      %v484 = vrot.slane %v479, %v483
      %v485 = vlaneseq
      %v486 = vshrl.u32 %v485, 7
      %v487 = vsub.s32 1, %v486
      %v488 = vrot.slane %v479, %v487
      %v489 = vlaneseq
      %v490 = vshrl.u32 %v489, 7
      %v491 = vsub.s32 2, %v490
      %v492 = vrot.slane %v479, %v491
      %v493 = vlaneseq
      %v494 = vshrl.u32 %v493, 7
      %v495 = vsub.s32 3, %v494
      %v496 = vrot.slane %v479, %v495
      %v501 = vmul.f32 %v478, %v484
      %v502 = vmul.f32 %v477, %v488
      %v503 = vmul.f32 %v476, %v492
      %v504 = vmul.f32 %v475, %v496
      %505 = vrot.lane.b32.xlu0 %v460, 16
      %v506 = vpop.permute.xlu0 %505
      %507 = vrot.lane.b32.xlu0 %v461, 16
      %v508 = vpop.permute.xlu0 %507
      %509 = vrot.lane.b32.xlu0 %v462, 16
      %v510 = vpop.permute.xlu0 %509
      %511 = vrot.lane.b32.xlu0 %v463, 16
      %v512 = vpop.permute.xlu0 %511
      %vm513 = vcmp.lt.s32.totalorder %v473, 16
      %v514 = vsel %vm513, %v510, %v512
      %v515 = vsel %vm513, %v508, %v510
      %v516 = vsel %vm513, %v506, %v508
      %v517 = vsel %vm513, %v512, %v506
      %s518 = scalar_lea.vmem %s1, 1
      %v519 = vld [vmem:[%s518] ss:$8 sm:$0xf]
      %v521 = vlaneseq
      %v522 = vshrl.u32 %v521, 7
      %v523 = vsub.s32 0, %v522
      %v524 = vrot.slane %v519, %v523
      %v525 = vlaneseq
      %v526 = vshrl.u32 %v525, 7
      %v527 = vsub.s32 1, %v526
      %v528 = vrot.slane %v519, %v527
      %v529 = vlaneseq
      %v530 = vshrl.u32 %v529, 7
      %v531 = vsub.s32 2, %v530
      %v532 = vrot.slane %v519, %v531
      %v533 = vlaneseq
      %v534 = vshrl.u32 %v533, 7
      %v535 = vsub.s32 3, %v534
      %v536 = vrot.slane %v519, %v535
      %v541 = vmul.f32 %v517, %v524
      %v542 = vmul.f32 %v516, %v528
      %v543 = vmul.f32 %v515, %v532
      %v544 = vmul.f32 %v514, %v536
      %545 = vrot.lane.b32.xlu0 %v460, 15
      %v546 = vpop.permute.xlu0 %545
      %547 = vrot.lane.b32.xlu0 %v461, 15
      %v548 = vpop.permute.xlu0 %547
      %549 = vrot.lane.b32.xlu0 %v462, 15
      %v550 = vpop.permute.xlu0 %549
      %551 = vrot.lane.b32.xlu0 %v463, 15
      %v552 = vpop.permute.xlu0 %551
      %vm553 = vcmp.lt.s32.totalorder %v473, 15
      %v554 = vsel %vm553, %v550, %v552
      %v555 = vsel %vm553, %v548, %v550
      %v556 = vsel %vm553, %v546, %v548
      %v557 = vsel %vm553, %v552, %v546
      %s558 = scalar_lea.vmem %s1, 2
      %v559 = vld [vmem:[%s558] ss:$8 sm:$0xf]
      %v561 = vlaneseq
      %v562 = vshrl.u32 %v561, 7
      %v563 = vsub.s32 0, %v562
      %v564 = vrot.slane %v559, %v563
      %v565 = vlaneseq
      %v566 = vshrl.u32 %v565, 7
      %v567 = vsub.s32 1, %v566
      %v568 = vrot.slane %v559, %v567
      %v569 = vlaneseq
      %v570 = vshrl.u32 %v569, 7
      %v571 = vsub.s32 2, %v570
      %v572 = vrot.slane %v559, %v571
      %v573 = vlaneseq
      %v574 = vshrl.u32 %v573, 7
      %v575 = vsub.s32 3, %v574
      %v576 = vrot.slane %v559, %v575
      %v581 = vmul.f32 %v557, %v564
      %v582 = vmul.f32 %v556, %v568
      %v583 = vmul.f32 %v555, %v572
      %v584 = vmul.f32 %v554, %v576
      %585 = vrot.lane.b32.xlu0 %v460, 1
      %v586 = vpop.permute.xlu0 %585
      %587 = vrot.lane.b32.xlu0 %v461, 1
      %v588 = vpop.permute.xlu0 %587
      %589 = vrot.lane.b32.xlu0 %v462, 1
      %v590 = vpop.permute.xlu0 %589
      %591 = vrot.lane.b32.xlu0 %v463, 1
      %v592 = vpop.permute.xlu0 %591
      %vm593 = vcmp.lt.s32.totalorder %v473, 1
      %v594 = vsel %vm593, %v590, %v592
      %v595 = vsel %vm593, %v588, %v590
      %v596 = vsel %vm593, %v586, %v588
      %v597 = vsel %vm593, %v592, %v586
      %s598 = scalar_lea.vmem %s1, 3
      %v599 = vld [vmem:[%s598] ss:$8 sm:$0xf]
      %v601 = vlaneseq
      %v602 = vshrl.u32 %v601, 7
      %v603 = vsub.s32 0, %v602
      %v604 = vrot.slane %v599, %v603
      %v605 = vlaneseq
      %v606 = vshrl.u32 %v605, 7
      %v607 = vsub.s32 1, %v606
      %v608 = vrot.slane %v599, %v607
      %v609 = vlaneseq
      %v610 = vshrl.u32 %v609, 7
      %v611 = vsub.s32 2, %v610
      %v612 = vrot.slane %v599, %v611
      %v613 = vlaneseq
      %v614 = vshrl.u32 %v613, 7
      %v615 = vsub.s32 3, %v614
      %v616 = vrot.slane %v599, %v615
      %v621 = vmul.f32 %v597, %v604
      %v622 = vmul.f32 %v596, %v608
      %v623 = vmul.f32 %v595, %v612
      %v624 = vmul.f32 %v594, %v616
      %625 = vrot.lane.b32.xlu0 %v460, 127
      %v626 = vpop.permute.xlu0 %625
      %627 = vrot.lane.b32.xlu0 %v461, 127
      %v628 = vpop.permute.xlu0 %627
      %629 = vrot.lane.b32.xlu0 %v462, 127
      %v630 = vpop.permute.xlu0 %629
      %631 = vrot.lane.b32.xlu0 %v463, 127
      %v632 = vpop.permute.xlu0 %631
      %vm633 = vcmp.lt.s32.totalorder %v473, 127
      %v634 = vsel %vm633, %v630, %v632
      %v635 = vsel %vm633, %v628, %v630
      %v636 = vsel %vm633, %v626, %v628
      %v637 = vsel %vm633, %v632, %v626
      %s638 = scalar_lea.vmem %s1, 5
      %v639 = vld [vmem:[%s638] ss:$8 sm:$0xf]
      %v641 = vlaneseq
      %v642 = vshrl.u32 %v641, 7
      %v643 = vsub.s32 0, %v642
      %v644 = vrot.slane %v639, %v643
      %v645 = vlaneseq
      %v646 = vshrl.u32 %v645, 7
      %v647 = vsub.s32 1, %v646
      %v648 = vrot.slane %v639, %v647
      %v649 = vlaneseq
      %v650 = vshrl.u32 %v649, 7
      %v651 = vsub.s32 2, %v650
      %v652 = vrot.slane %v639, %v651
      %v653 = vlaneseq
      %v654 = vshrl.u32 %v653, 7
      %v655 = vsub.s32 3, %v654
      %v656 = vrot.slane %v639, %v655
      %v661 = vmul.f32 %v636, %v644
      %v662 = vmul.f32 %v635, %v648
      %v663 = vmul.f32 %v634, %v652
      %v664 = vmul.f32 %v637, %v656
      %665 = vrot.lane.b32.xlu0 %v460, 113
      %v666 = vpop.permute.xlu0 %665
      %667 = vrot.lane.b32.xlu0 %v461, 113
      %v668 = vpop.permute.xlu0 %667
      %669 = vrot.lane.b32.xlu0 %v462, 113
      %v670 = vpop.permute.xlu0 %669
      %671 = vrot.lane.b32.xlu0 %v463, 113
      %v672 = vpop.permute.xlu0 %671
      %vm673 = vcmp.lt.s32.totalorder %v473, 113
      %v674 = vsel %vm673, %v670, %v672
      %v675 = vsel %vm673, %v668, %v670
      %v676 = vsel %vm673, %v666, %v668
      %v677 = vsel %vm673, %v672, %v666
      %s678 = scalar_lea.vmem %s1, 6
      %v679 = vld [vmem:[%s678] ss:$8 sm:$0xf]
      %v681 = vlaneseq
      %v682 = vshrl.u32 %v681, 7
      %v683 = vsub.s32 0, %v682
      %v684 = vrot.slane %v679, %v683
      %v685 = vlaneseq
      %v686 = vshrl.u32 %v685, 7
      %v687 = vsub.s32 1, %v686
      %v688 = vrot.slane %v679, %v687
      %v689 = vlaneseq
      %v690 = vshrl.u32 %v689, 7
      %v691 = vsub.s32 2, %v690
      %v692 = vrot.slane %v679, %v691
      %v693 = vlaneseq
      %v694 = vshrl.u32 %v693, 7
      %v695 = vsub.s32 3, %v694
      %v696 = vrot.slane %v679, %v695
      %v701 = vmul.f32 %v676, %v684
      %v702 = vmul.f32 %v675, %v688
      %v703 = vmul.f32 %v674, %v692
      %v704 = vmul.f32 %v677, %v696
      %705 = vrot.lane.b32.xlu0 %v460, 112
      %v706 = vpop.permute.xlu0 %705
      %707 = vrot.lane.b32.xlu0 %v461, 112
      %v708 = vpop.permute.xlu0 %707
      %709 = vrot.lane.b32.xlu0 %v462, 112
      %v710 = vpop.permute.xlu0 %709
      %711 = vrot.lane.b32.xlu0 %v463, 112
      %v712 = vpop.permute.xlu0 %711
      %vm713 = vcmp.lt.s32.totalorder %v473, 112
      %v714 = vsel %vm713, %v710, %v712
      %v715 = vsel %vm713, %v708, %v710
      %v716 = vsel %vm713, %v706, %v708
      %v717 = vsel %vm713, %v712, %v706
      %s718 = scalar_lea.vmem %s1, 7
      %v719 = vld [vmem:[%s718] ss:$8 sm:$0xf]
      %v721 = vlaneseq
      %v722 = vshrl.u32 %v721, 7
      %v723 = vsub.s32 0, %v722
      %v724 = vrot.slane %v719, %v723
      %v725 = vlaneseq
      %v726 = vshrl.u32 %v725, 7
      %v727 = vsub.s32 1, %v726
      %v728 = vrot.slane %v719, %v727
      %v729 = vlaneseq
      %v730 = vshrl.u32 %v729, 7
      %v731 = vsub.s32 2, %v730
      %v732 = vrot.slane %v719, %v731
      %v733 = vlaneseq
      %v734 = vshrl.u32 %v733, 7
      %v735 = vsub.s32 3, %v734
      %v736 = vrot.slane %v719, %v735
      %v741 = vmul.f32 %v716, %v724
      %v742 = vmul.f32 %v715, %v728
      %v743 = vmul.f32 %v714, %v732
      %v744 = vmul.f32 %v717, %v736
      %745 = vrot.lane.b32.xlu0 %v460, 111
      %v746 = vpop.permute.xlu0 %745
      %747 = vrot.lane.b32.xlu0 %v461, 111
      %v748 = vpop.permute.xlu0 %747
      %749 = vrot.lane.b32.xlu0 %v462, 111
      %v750 = vpop.permute.xlu0 %749
      %751 = vrot.lane.b32.xlu0 %v463, 111
      %v752 = vpop.permute.xlu0 %751
      %vm753 = vcmp.lt.s32.totalorder %v473, 111
      %v754 = vsel %vm753, %v750, %v752
      %v755 = vsel %vm753, %v748, %v750
      %v756 = vsel %vm753, %v746, %v748
      %v757 = vsel %vm753, %v752, %v746
      %s758 = scalar_lea.vmem %s1, 32
      %v759 = vld [vmem:[%s758] ss:$8 sm:$0xf]
      %v761 = vlaneseq
      %v762 = vshrl.u32 %v761, 7
      %v763 = vsub.s32 0, %v762
      %v764 = vrot.slane %v759, %v763
      %v765 = vlaneseq
      %v766 = vshrl.u32 %v765, 7
      %v767 = vsub.s32 1, %v766
      %v768 = vrot.slane %v759, %v767
      %v769 = vlaneseq
      %v770 = vshrl.u32 %v769, 7
      %v771 = vsub.s32 2, %v770
      %v772 = vrot.slane %v759, %v771
      %v773 = vlaneseq
      %v774 = vshrl.u32 %v773, 7
      %v775 = vsub.s32 3, %v774
      %v776 = vrot.slane %v759, %v775
      %v781 = vmul.f32 %v756, %v764
      %v782 = vmul.f32 %v755, %v768
      %v783 = vmul.f32 %v754, %v772
      %v784 = vmul.f32 %v757, %v776
      %v785 = vld [vmem:[%s316] sm:$0xf]
      %v786 = vpack.c.bf16 %v541, %v501
      %v787 = vpack.c.bf16 %v542, %v502
      %v788 = vpack.c.bf16 %v543, %v503
      %v789 = vpack.c.bf16 %v544, %v504
      %v790 = vpack.c.bf16 %v621, %v581
      %v791 = vpack.c.bf16 %v622, %v582
      %v792 = vpack.c.bf16 %v623, %v583
      %v793 = vpack.c.bf16 %v624, %v584
      %v794 = vpack.c.bf16 %v661, %v460
      %v795 = vpack.c.bf16 %v662, %v461
      %v796 = vpack.c.bf16 %v663, %v462
      %v797 = vpack.c.bf16 %v664, %v463
      %v798 = vpack.c.bf16 %v741, %v701
      %v799 = vpack.c.bf16 %v742, %v702
      %v800 = vpack.c.bf16 %v743, %v703
      %v801 = vpack.c.bf16 %v744, %v704
      %v802 = vpack.c.bf16 %v781, %v781
      %v803 = vpack.c.bf16 %v782, %v782
      %v804 = vpack.c.bf16 %v783, %v783
      %v805 = vpack.c.bf16 %v784, %v784
      %806 = vset.pattern.permute.xlu0 1
      %807 = vperm.xlu0 %806, %v351
      %v808 = vpop.permute.xlu0 %807
      %vm810 = vcmask 588800
      %v812 = vsel %vm810, %v785, 0
      %v815 = vsel %vm361, %v802, 0
      %v818 = vsel %vm361, %v803, 0
      %v821 = vsel %vm361, %v804, 0
      %v824 = vsel %vm361, %v805, 0
      %826 = vmatprep.subr.bf16.mxu0 %v787
      %827 = vmatpush1.bf16.msra.mxu0 %v786
      %828 = vmatprep.subr.bf16.mxu0 %v791
      %829 = vmatpush1.bf16.msra.mxu0 %v790
      %830 = vmatprep.subr.bf16.mxu0 %v795
      %831 = vmatpush1.bf16.msra.mxu0 %v794
      %832 = vmatprep.subr.bf16.mxu0 %v799
      %833 = vmatpush1.bf16.msra.mxu0 %v798
      %834 = vmatprep.subr.bf16.mxu0 %v818
      %835 = vmatpush1.bf16.msra.mxu0 %v815
      %836 = vmatprep.subr.bf16.mxu0 0
      %837 = vmatpush1.bf16.msra.mxu0 0
      %838 = vmatprep.subr.bf16.mxu0 0
      %839 = vmatpush1.bf16.msra.mxu0 0
      %840 = vmatprep.subr.bf16.mxu0 0
      %841 = vmatpush1.bf16.msra.mxu0 0
      %842 = vmatprep.subr.bf16.mxu0 0
      %843 = vmatpush1.bf16.msra.mxu0 0
      %844 = vmatprep.subr.bf16.mxu0 0
      %845 = vmatpush1.bf16.msra.mxu0 0
      %846 = vmatprep.subr.bf16.mxu0 0
      %847 = vmatpush1.bf16.msra.mxu0 0
      %848 = vmatprep.subr.bf16.mxu0 0
      %849 = vmatpush1.bf16.msra.mxu0 0
      %850 = vmatprep.subr.bf16.mxu0 0
      %851 = vmatpush1.bf16.msra.mxu0 0
      %852 = vmatprep.subr.bf16.mxu0 0
      %853 = vmatpush1.bf16.msra.mxu0 0
      %854 = vmatprep.subr.bf16.mxu0 0
      %855 = vmatpush1.bf16.msra.mxu0 0
      %856 = vmatprep.subr.bf16.mxu0 0
      %857 = vmatpush1.bf16.msra.mxu0 0
      %858 = vmatprep.mubr.bf16.mxu0 0
      %859 = vmatmul.mubr.bf16.gmra.mrb[0].mxu0 %v812
      %v860 = vpop.f32.mrb[0].mxu0
      %v861 = vadd.f32 %v808, %v860
      %v862 = vpop.f32.mrb[0].mxu0
      %v863 = vadd.f32 %v808, %v862
      %v864 = vpop.f32.mrb[0].mxu0
      %v865 = vpop.f32.mrb[0].mxu0
      %866 = vdwg.mxu0
      %867 = vmatprep.subr.bf16.mxu0 %v789
      %868 = vmatpush1.bf16.msra.mxu0 %v788
      %869 = vmatprep.subr.bf16.mxu0 %v793
      %870 = vmatpush1.bf16.msra.mxu0 %v792
      %871 = vmatprep.subr.bf16.mxu0 %v797
      %872 = vmatpush1.bf16.msra.mxu0 %v796
      %873 = vmatprep.subr.bf16.mxu0 %v801
      %874 = vmatpush1.bf16.msra.mxu0 %v800
      %875 = vmatprep.subr.bf16.mxu0 %v824
      %876 = vmatpush1.bf16.msra.mxu0 %v821
      %877 = vmatprep.subr.bf16.mxu0 0
      %878 = vmatpush1.bf16.msra.mxu0 0
      %879 = vmatprep.subr.bf16.mxu0 0
      %880 = vmatpush1.bf16.msra.mxu0 0
      %881 = vmatprep.subr.bf16.mxu0 0
      %882 = vmatpush1.bf16.msra.mxu0 0
      %883 = vmatprep.subr.bf16.mxu0 0
      %884 = vmatpush1.bf16.msra.mxu0 0
      %885 = vmatprep.subr.bf16.mxu0 0
      %886 = vmatpush1.bf16.msra.mxu0 0
      %887 = vmatprep.subr.bf16.mxu0 0
      %888 = vmatpush1.bf16.msra.mxu0 0
      %889 = vmatprep.subr.bf16.mxu0 0
      %890 = vmatpush1.bf16.msra.mxu0 0
      %891 = vmatprep.subr.bf16.mxu0 0
      %892 = vmatpush1.bf16.msra.mxu0 0
      %893 = vmatprep.subr.bf16.mxu0 0
      %894 = vmatpush1.bf16.msra.mxu0 0
      %895 = vmatprep.subr.bf16.mxu0 0
      %896 = vmatpush1.bf16.msra.mxu0 0
      %897 = vmatprep.subr.bf16.mxu0 0
      %898 = vmatpush1.bf16.msra.mxu0 0
      %899 = vmatprep.mubr.bf16.mxu0 0
      %900 = vmatmul.mubr.bf16.gmra.mrb[0].mxu0 %v812
      %v901 = vpop.f32.mrb[0].mxu0
      %v902 = vadd.f32 %v808, %v901
      %v903 = vpop.f32.mrb[0].mxu0
      %v904 = vadd.f32 %v808, %v903
      %v905 = vpop.f32.mrb[0].mxu0
      %v906 = vpop.f32.mrb[0].mxu0
      %907 = vdwg.mxu0
      %v908 = vmul.f32 %v861, 0.2
      %v909 = vmul.f32 %v863, 0.2
      %v910 = vmul.f32 %v902, 0.2
      %v911 = vmul.f32 %v904, 0.2
      %v912 = vmax.f32 %v861, %v908
      %v913 = vmax.f32 %v863, %v909
      %v914 = vmax.f32 %v902, %v910
      %v915 = vmax.f32 %v904, %v911
      %v916 = vld [vmem:[%s320] sm:$0xf]
      %v917 = vpack.c.bf16 %v912, %v912
      %v918 = vpack.c.bf16 %v913, %v913
      %v919 = vpack.c.bf16 %v914, %v914
      %v920 = vpack.c.bf16 %v915, %v915
      %v921 = vld [vmem:[%s328] sm:$0xff]
      %923 = vset.pattern.permute.xlu0 0
      %924 = vperm.xlu0 %923, %v921
      %v925 = vpop.permute.xlu0 %924
      %v928 = vsel %vm357, %v916, 0
      %v931 = vsel %vm361, %v917, 0
      %v934 = vsel %vm361, %v918, 0
      %v937 = vsel %vm361, %v919, 0
      %v940 = vsel %vm361, %v920, 0
      %942 = vmatprep.subr.bf16.mxu0 %v934
      %943 = vmatpush1.bf16.msra.mxu0 %v931
      %944 = vmatprep.subr.bf16.mxu0 0
      %945 = vmatpush1.bf16.msra.mxu0 0
      %946 = vmatprep.subr.bf16.mxu0 0
      %947 = vmatpush1.bf16.msra.mxu0 0
      %948 = vmatprep.subr.bf16.mxu0 0
      %949 = vmatpush1.bf16.msra.mxu0 0
      %950 = vmatprep.subr.bf16.mxu0 0
      %951 = vmatpush1.bf16.msra.mxu0 0
      %952 = vmatprep.subr.bf16.mxu0 0
      %953 = vmatpush1.bf16.msra.mxu0 0
      %954 = vmatprep.subr.bf16.mxu0 0
      %955 = vmatpush1.bf16.msra.mxu0 0
      %956 = vmatprep.subr.bf16.mxu0 0
      %957 = vmatpush1.bf16.msra.mxu0 0
      %958 = vmatprep.subr.bf16.mxu0 0
      %959 = vmatpush1.bf16.msra.mxu0 0
      %960 = vmatprep.subr.bf16.mxu0 0
      %961 = vmatpush1.bf16.msra.mxu0 0
      %962 = vmatprep.subr.bf16.mxu0 0
      %963 = vmatpush1.bf16.msra.mxu0 0
      %964 = vmatprep.subr.bf16.mxu0 0
      %965 = vmatpush1.bf16.msra.mxu0 0
      %966 = vmatprep.subr.bf16.mxu0 0
      %967 = vmatpush1.bf16.msra.mxu0 0
      %968 = vmatprep.subr.bf16.mxu0 0
      %969 = vmatpush1.bf16.msra.mxu0 0
      %970 = vmatprep.subr.bf16.mxu0 0
      %971 = vmatpush1.bf16.msra.mxu0 0
      %972 = vmatprep.subr.bf16.mxu0 0
      %973 = vmatpush1.bf16.msra.mxu0 0
      %974 = vmatprep.mubr.bf16.mxu0 0
      %975 = vmatmul.mubr.bf16.gmra.mrb[0].mxu0 %v928
      %v976 = vpop.f32.mrb[0].mxu0
      %v977 = vadd.f32 %v925, %v976
      %v978 = vpop.f32.mrb[0].mxu0
      %v979 = vadd.f32 %v925, %v978
      %v980 = vpop.f32.mrb[0].mxu0
      %v981 = vpop.f32.mrb[0].mxu0
      %982 = vdwg.mxu0
      %983 = vmatprep.subr.bf16.mxu0 %v940
      %984 = vmatpush1.bf16.msra.mxu0 %v937
      %985 = vmatprep.subr.bf16.mxu0 0
      %986 = vmatpush1.bf16.msra.mxu0 0
      %987 = vmatprep.subr.bf16.mxu0 0
      %988 = vmatpush1.bf16.msra.mxu0 0
      %989 = vmatprep.subr.bf16.mxu0 0
      %990 = vmatpush1.bf16.msra.mxu0 0
      %991 = vmatprep.subr.bf16.mxu0 0
      %992 = vmatpush1.bf16.msra.mxu0 0
      %993 = vmatprep.subr.bf16.mxu0 0
      %994 = vmatpush1.bf16.msra.mxu0 0
      %995 = vmatprep.subr.bf16.mxu0 0
      %996 = vmatpush1.bf16.msra.mxu0 0
      %997 = vmatprep.subr.bf16.mxu0 0
      %998 = vmatpush1.bf16.msra.mxu0 0
      %999 = vmatprep.subr.bf16.mxu0 0
      %1000 = vmatpush1.bf16.msra.mxu0 0
      %1001 = vmatprep.subr.bf16.mxu0 0
      %1002 = vmatpush1.bf16.msra.mxu0 0
      %1003 = vmatprep.subr.bf16.mxu0 0
      %1004 = vmatpush1.bf16.msra.mxu0 0
      %1005 = vmatprep.subr.bf16.mxu0 0
      %1006 = vmatpush1.bf16.msra.mxu0 0
      %1007 = vmatprep.subr.bf16.mxu0 0
      %1008 = vmatpush1.bf16.msra.mxu0 0
      %1009 = vmatprep.subr.bf16.mxu0 0
      %1010 = vmatpush1.bf16.msra.mxu0 0
      %1011 = vmatprep.subr.bf16.mxu0 0
      %1012 = vmatpush1.bf16.msra.mxu0 0
      %1013 = vmatprep.subr.bf16.mxu0 0
      %1014 = vmatpush1.bf16.msra.mxu0 0
      %1015 = vmatprep.mubr.bf16.mxu0 0
      %1016 = vmatmul.mubr.bf16.gmra.mrb[0].mxu0 %v928
      %v1017 = vpop.f32.mrb[0].mxu0
      %v1018 = vadd.f32 %v925, %v1017
      %v1019 = vpop.f32.mrb[0].mxu0
      %v1020 = vadd.f32 %v925, %v1019
      %v1021 = vpop.f32.mrb[0].mxu0
      %v1022 = vpop.f32.mrb[0].mxu0
      %1023 = vdwg.mxu0
      %v1024 = vadd.f32 %v977, %v342
      %v1025 = vadd.f32 %v979, %v343
      %v1026 = vadd.f32 %v1018, %v344
      %v1027 = vadd.f32 %v1020, %v345
      %v1028 = vadd.f32 %v1024, %v1025
      %v1029 = vadd.f32 %v1028, %v1026
      %v1030 = vadd.f32 %v1029, %v1027
      %1031 = vadd.xlane.f32.xlu0 %v1030
      %v1032 = vpop.xlane.xlu0 %1031
      %v1033 = vmul.f32 %v1032, 0.001953125
      %v1034 = vmul.f32 %v1024, %v1024
      %v1035 = vmul.f32 %v1025, %v1025
      %v1036 = vmul.f32 %v1026, %v1026
      %v1037 = vmul.f32 %v1027, %v1027
      %v1038 = vadd.f32 %v1034, %v1035
      %v1039 = vadd.f32 %v1038, %v1036
      %v1040 = vadd.f32 %v1039, %v1037
      %1041 = vadd.xlane.f32.xlu0 %v1040
      %v1042 = vpop.xlane.xlu0 %1041
      %v1043 = vmul.f32 %v1042, 0.001953125
      %v1044 = vmul.f32 %v1033, %v1033
      %v1045 = vsub.f32 %v1043, %v1044
      %v1046 = vadd.f32 %v1045, 1e-05
      %v1047 = vrsqrt.pop %v1046
      %v1048 = vmul.f32 %v921, %v1047
      %v1049 = vmul.f32 %v1033, %v1048
      %1051 = vrot.lane.b32.xlu0 %v1049, 1
      %v1052 = vpop.permute.xlu0 %1051
      %v1054 = vsub.f32 %v921, %v1052
      %1056 = vset.pattern.permute.xlu0 1
      %1057 = vperm.xlu0 %1056, %v1048
      %v1058 = vpop.permute.xlu0 %1057
      %v1060 = vmul.f32 %v1024, %v1058
      %v1061 = vmul.f32 %v1025, %v1058
      %v1062 = vmul.f32 %v1026, %v1058
      %v1063 = vmul.f32 %v1027, %v1058
      %1065 = vset.pattern.permute.xlu0 2
      %1066 = vperm.xlu0 %1065, %v1054
      %v1067 = vpop.permute.xlu0 %1066
      %v1069 = vadd.f32 %v1060, %v1067
      %v1070 = vadd.f32 %v1061, %v1067
      %v1071 = vadd.f32 %v1062, %v1067
      %v1072 = vadd.f32 %v1063, %v1067
      %v1073 = vmul.f32 %v1069, 0.2
      %v1074 = vmul.f32 %v1070, 0.2
      %v1075 = vmul.f32 %v1071, 0.2
      %v1076 = vmul.f32 %v1072, 0.2
      %v1077 = vmax.f32 %v1069, %v1073
      %v1078 = vmax.f32 %v1070, %v1074
      %v1079 = vmax.f32 %v1071, %v1075
      %v1080 = vmax.f32 %v1072, %v1076
      %1081 = vst [vmem:[%s7] sm:$0xff] %v1077
      %1082 = vst [vmem:[%s7 + $0x8] sm:$0xff] %v1078
      %1083 = vst [vmem:[%s7 + $0x10] sm:$0xff] %v1079
      %1084 = vst [vmem:[%s7 + $0x18] sm:$0xff] %v1080
      // Predicated region
      $region53: #{build_res_block_forward.1} parent=47 // pred_check
        %p1085 = pneg %p203
      $region54: #{build_res_block_forward.1} parent=47 // pred_check_branch
        %1087 = sbr.rel (%p1085) target = $region56
      $region55: #{build_res_block_forward.1} parent=47 // pred_region
        _
      $region56: #{build_res_block_forward.1} parent=47 // pred_fallthru
        _
      // Predicated region
      $region57: #{build_res_block_forward.1} parent=47 // pred_check
        %p1088 = pneg %p203
      $region58: #{build_res_block_forward.1} parent=47 // pred_check_branch
        %1090 = sbr.rel (%p1088) target = $region60
      $region59: #{build_res_block_forward.1} parent=47 // pred_region
        _
      $region60: #{build_res_block_forward.1} parent=47 // pred_fallthru
        _
    $region48: #{build_res_block_forward.1} parent=5 // pred_fallthru
      _
    %p1091 = scmp.le.s32.totalorder 2, %s13
    // Predicated region
    $region61: #{build_res_block_forward.1} parent=5 // pred_check
      %p1092 = pneg %p1091
    $region62: #{build_res_block_forward.1} parent=5 // pred_check_branch
      %1094 = sbr.rel (%p1092) target = $region64
    $region63: #{build_res_block_forward.1} parent=5 // pred_region
      %s1095 = ssub.s32 %s13, 2
    $region64: #{build_res_block_forward.1} parent=5 // pred_fallthru
      _
  $region6: #{build_res_block_forward.1} parent=0 // loop_footer
    %s17 = sadd.s32 1, %s13
  $region7: #{build_res_block_forward.1} parent=0 // loop_footer_branch
    %12 = sbr.rel target = $region3
  $region8: #{build_res_block_forward.1} parent=0 // loop_exit
    _

</llo_original>
